<compile_context>
chip_gen: v6e
topology: v6e:2x2x1
jax: 0.10.0
libtpu: 0.0.40
codegen_flags: <defaults>
</compile_context>

<pallas_src>
import functools

import jax
import jax.numpy as jnp
from jax.experimental import pallas as pl
from jax.experimental.pallas import tpu as pltpu


_VMEM_LIMIT_BYTES = 32 * 1024 * 1024   # <= scoped/physical caps on v5e/v6e/v7x
_VMEM_BUDGET_BYTES = 20 * 1024 * 1024  # per-grid-step footprint target (headroom left)


def _round_up(x: int, m: int) -> int:
    return ((x + m - 1) // m) * m


def _sublane_pack(dtype) -> int:
    # Sub-32-bit dtypes pack along sublanes: f32 -> 8, bf16 -> 16, int8 -> 32.
    return 8 * max(1, 4 // jnp.dtype(dtype).itemsize)


def _batch_tile(B: int, d1: int, d2: int, dtype) -> int:
    """Batch rows per grid step.  (d1, d2) are the (sublane, lane) dims of one row.

    Accounts for padded VMEM layout (d1 -> sublane multiple, d2 -> 128 lanes),
    double-buffered in/out blocks and ~2 block-sized f32 temporaries.
    """
    itemsize = jnp.dtype(dtype).itemsize
    io_row = _round_up(d1, _sublane_pack(dtype)) * _round_up(d2, 128) * itemsize
    f32_row = _round_up(d1, 8) * _round_up(d2, 128) * 4
    per_row = 2 * (io_row + io_row) + 2 * f32_row
    tb = max(1, _VMEM_BUDGET_BYTES // per_row)
    tb = min(tb, B)
    if B >= 2:
        # Keep at least two grid steps so both TensorCores get work (v7x megacore).
        tb = min(tb, pl.cdiv(B, 2))
    return int(tb)


def _use_channel_major(L: int, C: int) -> bool:
    # Typical LTSF channel counts (7, 21, ...) waste 95% of the lanes in (B, L, C);
    # put L on lanes instead.  Keep native layout once C is already lane-dense.
    return C < 128 and L > C


# ---------------------------------------------------------------------------
# Kernels
# ---------------------------------------------------------------------------
def _revin_norm_kernel(x_ref, w_ref, b_ref, y_ref, stats_ref, *,
                       eps: float, affine: bool, reduce_axis: int):
    # reduce_axis == 2: x_ref (TB, C, L), stats_ref (TB, C, 2), w/b (1, C, 1)
    # reduce_axis == 1: x_ref (TB, L, C), stats_ref (TB, 2, C), w/b (1, 1, C)
    x = x_ref[...].astype(jnp.float32)
    inv_n = 1.0 / x.shape[reduce_axis]
    mean = jnp.sum(x, axis=reduce_axis, keepdims=True) * inv_n
    ex2 = jnp.sum(x * x, axis=reduce_axis, keepdims=True) * inv_n
    var = jnp.maximum(ex2 - mean * mean, 0.0)            # unbiased=False
    stdev = jnp.sqrt(var + eps)
    inv_std = 1.0 / stdev                                 # tiny (per b,c) tensor only
    if affine:
        scale = w_ref[...] * inv_std
        offset = b_ref[...] - mean * scale
    else:
        scale = inv_std
        offset = -(mean * scale)
    y_ref[...] = (x * scale + offset).astype(y_ref.dtype)  # single FMA on the big block
    if reduce_axis == 1:
        stats_ref[:, 0:1, :] = mean
        stats_ref[:, 1:2, :] = stdev
    else:
        stats_ref[:, :, 0:1] = mean
        stats_ref[:, :, 1:2] = stdev


def _revin_denorm_kernel(y_ref, invw_ref, b_ref, mean_ref, stdev_ref, x_ref, *,
                         affine: bool):
    y = y_ref[...].astype(jnp.float32)
    mean = mean_ref[...]
    stdev = stdev_ref[...]
    if affine:
        scale = stdev * invw_ref[...]          # inv_w precomputed in the wrapper
        offset = mean - b_ref[...] * scale
    else:
        scale = stdev
        offset = mean
    x_ref[...] = (y * scale + offset).astype(x_ref.dtype)


# ---------------------------------------------------------------------------
# Wrappers
# ---------------------------------------------------------------------------
def revin_norm(x, weight, bias, *, eps: float = 1e-5, affine: bool = True):
    """x: (B, L, C) -> (y, mean, stdev) matching RevIN.forward(x, 'norm')."""
    B, L, C = x.shape
    itemsize = jnp.dtype(x.dtype).itemsize
    channel_major = _use_channel_major(L, C)

    if channel_major:
        xk = jnp.swapaxes(x, 1, 2)                          # (B, C, L)
        d1, d2, reduce_axis = C, L, 2
        wk = jnp.asarray(weight, jnp.float32).reshape(1, C, 1)
        bk = jnp.asarray(bias, jnp.float32).reshape(1, C, 1)
        stats_shape = (B, C, 2)
    else:
        xk = x
        d1, d2, reduce_axis = L, C, 1
        wk = jnp.asarray(weight, jnp.float32).reshape(1, 1, C)
        bk = jnp.asarray(bias, jnp.float32).reshape(1, 1, C)
        stats_shape = (B, 2, C)

    tb = _batch_tile(B, d1, d2, x.dtype)
    kernel = functools.partial(_revin_norm_kernel, eps=float(eps),
                               affine=bool(affine), reduce_axis=reduce_axis)
    cost = pl.CostEstimate(
        flops=6 * B * L * C,
        transcendentals=2 * B * C,
        bytes_accessed=2 * B * L * C * itemsize + 2 * B * C * 4 + 2 * C * 4)

    yk, stats = pl.pallas_call(
        kernel,
        out_shape=(jax.ShapeDtypeStruct(xk.shape, x.dtype),
                   jax.ShapeDtypeStruct(stats_shape, jnp.float32)),
        grid_spec=pltpu.PrefetchScalarGridSpec(
            num_scalar_prefetch=0,
            grid=(pl.cdiv(B, tb),),
            in_specs=[
                pl.BlockSpec((tb, d1, d2), lambda i: (i, 0, 0)),
                pl.BlockSpec(wk.shape, lambda i: (0, 0, 0)),
                pl.BlockSpec(bk.shape, lambda i: (0, 0, 0)),
            ],
            out_specs=(
                pl.BlockSpec((tb, d1, d2), lambda i: (i, 0, 0)),
                pl.BlockSpec((tb,) + stats_shape[1:], lambda i: (i, 0, 0)),
            ),
        ),
        compiler_params=pltpu.CompilerParams(
            dimension_semantics=("parallel",),
            vmem_limit_bytes=_VMEM_LIMIT_BYTES),
        cost_estimate=cost,
    )(xk, wk, bk)

    if channel_major:
        y = jnp.swapaxes(yk, 1, 2)
        mean = jnp.swapaxes(stats[:, :, 0:1], 1, 2)         # (B, 1, C)
        stdev = jnp.swapaxes(stats[:, :, 1:2], 1, 2)
    else:
        y = yk
        mean = stats[:, 0:1, :]
        stdev = stats[:, 1:2, :]
    return y, mean, stdev


def revin_denorm(y, mean, stdev, weight, bias, *, eps: float = 1e-5,
                 affine: bool = True):
    """y: (B, L, C), mean/stdev: (B, 1, C) -> x matching RevIN.forward(y, 'denorm')."""
    B, L, C = y.shape
    itemsize = jnp.dtype(y.dtype).itemsize
    channel_major = _use_channel_major(L, C)

    inv_w = 1.0 / (jnp.asarray(weight, jnp.float32) + float(eps) ** 2)  # O(C), wrapper
    bias_f = jnp.asarray(bias, jnp.float32)
    mean = jnp.asarray(mean, jnp.float32).reshape(B, 1, C)
    stdev = jnp.asarray(stdev, jnp.float32).reshape(B, 1, C)

    if channel_major:
        yk = jnp.swapaxes(y, 1, 2)                          # (B, C, L)
        d1, d2 = C, L
        invw_k = inv_w.reshape(1, C, 1)
        bias_k = bias_f.reshape(1, C, 1)
        mean_k = jnp.swapaxes(mean, 1, 2)                   # (B, C, 1)
        stdev_k = jnp.swapaxes(stdev, 1, 2)
    else:
        yk = y
        d1, d2 = L, C
        invw_k = inv_w.reshape(1, 1, C)
        bias_k = bias_f.reshape(1, 1, C)
        mean_k = mean
        stdev_k = stdev

    tb = _batch_tile(B, d1, d2, y.dtype)
    stat_block = (tb,) + mean_k.shape[1:]
    kernel = functools.partial(_revin_denorm_kernel, affine=bool(affine))
    cost = pl.CostEstimate(
        flops=2 * B * L * C,
        transcendentals=0,
        bytes_accessed=2 * B * L * C * itemsize + 2 * B * C * 4 + 2 * C * 4)

    xk = pl.pallas_call(
        kernel,
        out_shape=jax.ShapeDtypeStruct(yk.shape, y.dtype),
        grid_spec=pltpu.PrefetchScalarGridSpec(
            num_scalar_prefetch=0,
            grid=(pl.cdiv(B, tb),),
            in_specs=[
                pl.BlockSpec((tb, d1, d2), lambda i: (i, 0, 0)),
                pl.BlockSpec(invw_k.shape, lambda i: (0, 0, 0)),
                pl.BlockSpec(bias_k.shape, lambda i: (0, 0, 0)),
                pl.BlockSpec(stat_block, lambda i: (i, 0, 0)),
                pl.BlockSpec(stat_block, lambda i: (i, 0, 0)),
            ],
            out_specs=pl.BlockSpec((tb, d1, d2), lambda i: (i, 0, 0)),
        ),
        compiler_params=pltpu.CompilerParams(
            dimension_semantics=("parallel",),
            vmem_limit_bytes=_VMEM_LIMIT_BYTES),
        cost_estimate=cost,
    )(yk, invw_k, bias_k, mean_k, stdev_k)

    return jnp.swapaxes(xk, 1, 2) if channel_major else xk


class RevIN:
    """Python-side mirror of the PyTorch module (mode dispatch + stat storage)."""

    def __init__(self, num_features: int, eps: float = 1e-5, affine: bool = True):
        self.num_features = num_features
        self.eps = eps
        self.affine = affine
        self.affine_weight = jnp.ones((num_features,), jnp.float32)
        self.affine_bias = jnp.zeros((num_features,), jnp.float32)
        self.mean = None
        self.stdev = None

    def __call__(self, x, mode: str):
        if mode == "norm":
            y, self.mean, self.stdev = revin_norm(
                x, self.affine_weight, self.affine_bias,
                eps=self.eps, affine=self.affine)
            return y
        elif mode == "denorm":
            return revin_denorm(
                x, self.mean, self.stdev, self.affine_weight, self.affine_bias,
                eps=self.eps, affine=self.affine)
        raise NotImplementedError(mode)


# ---------------------------------------------------------------------------
# Pure-JAX reference
# ---------------------------------------------------------------------------
def _norm_ref(x, w, b, eps, affine):
    mean = jnp.mean(x, axis=1, keepdims=True)
    var = jnp.mean((x - mean) ** 2, axis=1, keepdims=True)
    stdev = jnp.sqrt(var + eps)
    y = (x - mean) / stdev
    if affine:
        y = y * w + b
    return y, mean, stdev


def _denorm_ref(y, mean, stdev, w, b, eps, affine):
    if affine:
        y = (y - b) / (w + eps * eps)
    return y * stdev + mean


if __name__ == "__main__":
    eps = 1e-5

    def _check(B, L, C):
        key = jax.random.PRNGKey(0)
        kx, kw, kb = jax.random.split(key, 3)
        x = jax.random.normal(kx, (B, L, C), dtype=jnp.float32)
        weight = 1.0 + 0.1 * jax.random.normal(kw, (C,), dtype=jnp.float32)
        bias = 0.1 * jax.random.normal(kb, (C,), dtype=jnp.float32)

        layer = RevIN(C, eps=eps, affine=True)
        layer.affine_weight = weight
        layer.affine_bias = bias

        y = jax.block_until_ready(layer(x, "norm"))
        y_ref, mean_ref, stdev_ref = _norm_ref(x, weight, bias, eps, True)
        assert y.shape == y_ref.shape
        assert jnp.allclose(y, y_ref, atol=1e-5, rtol=1e-5), "norm mismatch"
        assert jnp.allclose(layer.mean, mean_ref, atol=1e-5, rtol=1e-5), "mean mismatch"
        assert jnp.allclose(layer.stdev, stdev_ref, atol=1e-5, rtol=1e-5), "stdev mismatch"

        x_rec = jax.block_until_ready(layer(y, "denorm"))
        x_rec_ref = _denorm_ref(y_ref, mean_ref, stdev_ref, weight, bias, eps, True)
        assert jnp.allclose(x_rec, x_rec_ref, atol=1e-5, rtol=1e-5), "denorm mismatch"
        assert jnp.allclose(x_rec, x, atol=1e-4, rtol=1e-4), "round-trip mismatch"

    _check(2, 16, 8)     # small-C (lane-dense channel-major) path
    _check(2, 8, 128)    # wide-C (native channel-last) path
    print("KERNEL_OK")
</pallas_src>

<mosaic_0001>
module attributes {stable_mosaic.version = 11 : i64} {
  func.func @_revin_norm_kernel(%arg0: i32, %arg1: memref<1x8x16xf32, #tpu.memory_space<vmem>>, %arg2: memref<1x8x1xf32, #tpu.memory_space<vmem>>, %arg3: memref<1x8x1xf32, #tpu.memory_space<vmem>>, %arg4: memref<1x8x16xf32, #tpu.memory_space<vmem>>, %arg5: memref<1x8x2xf32, #tpu.memory_space<vmem>>) attributes {dimension_semantics = [#tpu.dimension_semantics<parallel>], iteration_bounds = array<i64: 2>, scalar_prefetch = 0 : i64, scratch_operands = 0 : i64, tpu.core_type = #tpu.core_type<tc>, window_params = [{transform_indices = @transform_0, window_bounds = array<i64: 1, 8, 16>}, {pipeline_mode = #tpu.pipeline_mode<synchronous>, transform_indices = @transform_1, window_bounds = array<i64: 1, 8, 1>}, {pipeline_mode = #tpu.pipeline_mode<synchronous>, transform_indices = @transform_2, window_bounds = array<i64: 1, 8, 1>}, {transform_indices = @transform_3, window_bounds = array<i64: 1, 8, 16>}, {transform_indices = @transform_4, window_bounds = array<i64: 1, 8, 2>}]} {
    %c0 = arith.constant 0 : index
    %c0_0 = arith.constant 0 : index
    %c0_1 = arith.constant 0 : index
    %0 = vector.load %arg1[%c0, %c0_0, %c0_1] : memref<1x8x16xf32, #tpu.memory_space<vmem>>, vector<1x8x16xf32>
    %cst = arith.constant dense<0.000000e+00> : vector<1x8xf32>
    %1 = vector.multi_reduction <add>, %0, %cst [2] : vector<1x8x16xf32> to vector<1x8xf32>
    %2 = vector.shape_cast %1 : vector<1x8xf32> to vector<1x8x1xf32>
    %cst_2 = arith.constant 6.250000e-02 : f32
    %3 = vector.broadcast %cst_2 : f32 to vector<1x8x1xf32>
    %4 = arith.mulf %2, %3 : vector<1x8x1xf32>
    %5 = arith.mulf %0, %0 : vector<1x8x16xf32>
    %cst_3 = arith.constant dense<0.000000e+00> : vector<1x8xf32>
    %6 = vector.multi_reduction <add>, %5, %cst_3 [2] : vector<1x8x16xf32> to vector<1x8xf32>
    %7 = vector.shape_cast %6 : vector<1x8xf32> to vector<1x8x1xf32>
    %cst_4 = arith.constant 6.250000e-02 : f32
    %8 = vector.broadcast %cst_4 : f32 to vector<1x8x1xf32>
    %9 = arith.mulf %7, %8 : vector<1x8x1xf32>
    %10 = arith.mulf %4, %4 : vector<1x8x1xf32>
    %11 = arith.subf %9, %10 : vector<1x8x1xf32>
    %cst_5 = arith.constant 0.000000e+00 : f32
    %12 = vector.broadcast %cst_5 : f32 to vector<1x8x1xf32>
    %13 = arith.maximumf %11, %12 : vector<1x8x1xf32>
    %cst_6 = arith.constant 9.99999974E-6 : f32
    %14 = vector.broadcast %cst_6 : f32 to vector<1x8x1xf32>
    %15 = arith.addf %13, %14 : vector<1x8x1xf32>
    %16 = math.sqrt %15 : vector<1x8x1xf32>
    %cst_7 = arith.constant 1.000000e+00 : f32
    %17 = vector.broadcast %cst_7 : f32 to vector<1x8x1xf32>
    %18 = arith.divf %17, %16 : vector<1x8x1xf32>
    %c0_8 = arith.constant 0 : index
    %c0_9 = arith.constant 0 : index
    %c0_10 = arith.constant 0 : index
    %19 = vector.load %arg2[%c0_8, %c0_9, %c0_10] : memref<1x8x1xf32, #tpu.memory_space<vmem>>, vector<1x8x1xf32>
    %20 = arith.mulf %19, %18 : vector<1x8x1xf32>
    %c0_11 = arith.constant 0 : index
    %c0_12 = arith.constant 0 : index
    %c0_13 = arith.constant 0 : index
    %21 = vector.load %arg3[%c0_11, %c0_12, %c0_13] : memref<1x8x1xf32, #tpu.memory_space<vmem>>, vector<1x8x1xf32>
    %22 = arith.mulf %4, %20 : vector<1x8x1xf32>
    %23 = arith.subf %21, %22 : vector<1x8x1xf32>
    %24 = vector.broadcast %20 : vector<1x8x1xf32> to vector<1x8x16xf32>
    %25 = arith.mulf %0, %24 : vector<1x8x16xf32>
    %26 = vector.broadcast %23 : vector<1x8x1xf32> to vector<1x8x16xf32>
    %27 = arith.addf %25, %26 : vector<1x8x16xf32>
    %c0_14 = arith.constant 0 : index
    %c0_15 = arith.constant 0 : index
    %c0_16 = arith.constant 0 : index
    %28 = vector.load %arg4[%c0_14, %c0_15, %c0_16] : memref<1x8x16xf32, #tpu.memory_space<vmem>>, vector<1x8x16xf32>
    tpu.vector_store %arg4[%c0_14, %c0_15, %c0_16], %27 {strides = array<i32>} : memref<1x8x16xf32, #tpu.memory_space<vmem>>, vector<1x8x16xf32>,
    %c0_17 = arith.constant 0 : index
    %c0_18 = arith.constant 0 : index
    %c0_19 = arith.constant 0 : index
    %29 = vector.load %arg5[%c0_17, %c0_18, %c0_19] : memref<1x8x2xf32, #tpu.memory_space<vmem>>, vector<1x8x1xf32>
    tpu.vector_store %arg5[%c0_17, %c0_18, %c0_19], %4 {strides = array<i32>} : memref<1x8x2xf32, #tpu.memory_space<vmem>>, vector<1x8x1xf32>,
    %c0_20 = arith.constant 0 : index
    %c0_21 = arith.constant 0 : index
    %c1 = arith.constant 1 : index
    %30 = vector.load %arg5[%c0_20, %c0_21, %c1] : memref<1x8x2xf32, #tpu.memory_space<vmem>>, vector<1x8x1xf32>
    tpu.vector_store %arg5[%c0_20, %c0_21, %c1], %16 {strides = array<i32>} : memref<1x8x2xf32, #tpu.memory_space<vmem>>, vector<1x8x1xf32>,
    return
  }
  func.func @transform_0(%arg0: i32) -> (i32, i32, i32) {
    %c0_i32 = arith.constant 0 : i32
    %c0_i32_0 = arith.constant 0 : i32
    %c0_i32_1 = arith.constant 0 : i32
    return %arg0, %c0_i32, %c0_i32_0 : i32, i32, i32
  }
  func.func @transform_1(%arg0: i32) -> (i32, i32, i32) {
    %c0_i32 = arith.constant 0 : i32
    %c0_i32_0 = arith.constant 0 : i32
    %c0_i32_1 = arith.constant 0 : i32
    %c0_i32_2 = arith.constant 0 : i32
    return %c0_i32, %c0_i32_0, %c0_i32_1 : i32, i32, i32
  }
  func.func @transform_2(%arg0: i32) -> (i32, i32, i32) {
    %c0_i32 = arith.constant 0 : i32
    %c0_i32_0 = arith.constant 0 : i32
    %c0_i32_1 = arith.constant 0 : i32
    %c0_i32_2 = arith.constant 0 : i32
    return %c0_i32, %c0_i32_0, %c0_i32_1 : i32, i32, i32
  }
  func.func @transform_3(%arg0: i32) -> (i32, i32, i32) {
    %c0_i32 = arith.constant 0 : i32
    %c0_i32_0 = arith.constant 0 : i32
    %c0_i32_1 = arith.constant 0 : i32
    return %arg0, %c0_i32, %c0_i32_0 : i32, i32, i32
  }
  func.func @transform_4(%arg0: i32) -> (i32, i32, i32) {
    %c0_i32 = arith.constant 0 : i32
    %c0_i32_0 = arith.constant 0 : i32
    %c0_i32_1 = arith.constant 0 : i32
    return %arg0, %c0_i32, %c0_i32_0 : i32, i32, i32
  }
}

</mosaic_0001>

<llo_original>
// kernel: tpu_custom_call.1
$region0: #{tpu_custom_call.1}
  #allocation0 [shape = 'u32[]', space=smem, size = 0x4, offset = 0x4, fixed_abs, tag = 'smem constant byte address 0x4 - core index']
  #allocation1 [shape = 'u32[144,128]{1,0:T(1,128)}', space=vmem, size = 0x12000, scoped, tag = 'internal scratch']
  %s0 = inlined_call_operand.vmem [shape: f32[2,8,16], index: 0, kind: input, shape index: {}]
  %s1 = inlined_call_operand.vmem [shape: f32[1,8,1], index: 1, kind: input, shape index: {}]
  %s2 = inlined_call_operand.vmem [shape: f32[1,8,1], index: 2, kind: input, shape index: {}]
  %s3 = inlined_call_operand.hbm [shape: f32[2,8,16], index: 3, kind: output, shape index: {0}]
  %s4 = inlined_call_operand.vmem [shape: f32[2,8,2], index: 4, kind: output, shape index: {1}]
  %5 = xla_tuple %s3, %s4
  %s6 = sld [smem:[#allocation0]]
  $region53: #{tpu_custom_call.1} parent=0
    _
  %s8 = ssub.s32 1, %s6
  %s9 = scalar_select 0, %s8, %s6
  $region1: #{tpu_custom_call.1} parent=0
    #allocation2 [shape = 'u8[8192]{0}', space=vmem, size = 0x2000, scoped, tag = 'output window, operand 0']
    #allocation3 [shape = 's32[2]{0}', space=sflag, size = 0x8, scoped, tag = 'scoped memory for tpu_custom_call.1']
    %10 = vsyncpa [#allocation3], 0
    %s11 = scalar_lea.sflag [#allocation3], 1
    %12 = vsyncpa %s11, 0
    loop: start=0, step=1, limit=4
    $region2: #{tpu_custom_call.1} parent=1 // loop_pre_header
      _
    $region3: #{tpu_custom_call.1} parent=1 // loop_header
      %s14 = sphi 0, %s18
      %p15 = scmp.ge.s32.totalorder %s14, 4
      %s24 = sphi 0, %s26
      %s27 = sphi 0, %s24
      %s28 = sphi 0, %s27
      %s44 = sphi 0, %s28
      %s48 = sphi 0, %s48
      %s50 = sphi 0, %s48
      %s51 = sphi 0, %s50
      %s65 = sphi 0, %s51
      %s69 = sphi 0, %s69
      %s71 = sphi 0, %s69
      %s72 = sphi 0, %s71
      %s86 = sphi 0, %s72
      %s92 = sphi 0, %s94
      %s95 = sphi 0, %s92
      %s96 = sphi 0, %s95
      %s112 = sphi 0, %s96
      %s118 = sphi 0, %s120
      %s121 = sphi 0, %s118
      %s122 = sphi 0, %s121
      %s138 = sphi 0, %s122
    $region4: #{tpu_custom_call.1} parent=1 // loop_header_branch
      %17 = sbr.rel (%p15) target = $region8
    $region5: #{tpu_custom_call.1} parent=1 // loop_body
      %s19 = ssub.s32 %s14, 1
      %s20 = ssub.s32 %s14, 2
      %s21 = sadd.s32 %s14, 1
      %s22 = ssub.s32 %s14, %s21
      %p23 = scmp.eq.s32.totalorder %s22, 0
      %s25 = sadd.s32 %s24, 1
      %s26 = scalar_select %p23, %s24, %s25
      %p29 = pneg %p23
      %p30 = scmp.eq.s32.totalorder %s14, 1
      %p31 = por %p29, %p30
      %p32 = scmp.ne.s32.totalorder %s24, %s27
      %p33 = scmp.eq.s32.totalorder %s14, 0
      %p34 = por %p32, %p33
      %p35 = scmp.ne.s32.totalorder %s24, %s27
      %p36 = scmp.eq.s32.totalorder %s19, 1
      %p37 = por %p35, %p36
      %p38 = scmp.ne.s32.totalorder %s27, %s28
      %p39 = scmp.eq.s32.totalorder %s19, 0
      %p40 = por %p38, %p39
      %p41 = scmp.ne.s32.totalorder %s27, %s28
      %p42 = scmp.eq.s32.totalorder %s20, 1
      %p43 = por %p41, %p42
      %p45 = scmp.ne.s32.totalorder %s28, %s44
      %p46 = scmp.eq.s32.totalorder %s20, 0
      %p47 = por %p45, %p46
      %s49 = sadd.s32 %s48, 1
      %p52 = scmp.eq.s32.totalorder %s14, 1
      %p53 = scmp.ne.s32.totalorder %s48, %s50
      %p54 = scmp.eq.s32.totalorder %s14, 0
      %p55 = por %p53, %p54
      %p56 = scmp.ne.s32.totalorder %s48, %s50
      %p57 = scmp.eq.s32.totalorder %s19, 1
      %p58 = por %p56, %p57
      %p59 = scmp.ne.s32.totalorder %s50, %s51
      %p60 = scmp.eq.s32.totalorder %s19, 0
      %p61 = por %p59, %p60
      %p62 = scmp.ne.s32.totalorder %s50, %s51
      %p63 = scmp.eq.s32.totalorder %s20, 1
      %p64 = por %p62, %p63
      %p66 = scmp.ne.s32.totalorder %s51, %s65
      %p67 = scmp.eq.s32.totalorder %s20, 0
      %p68 = por %p66, %p67
      %s70 = sadd.s32 %s69, 1
      %p73 = scmp.eq.s32.totalorder %s14, 1
      %p74 = scmp.ne.s32.totalorder %s69, %s71
      %p75 = scmp.eq.s32.totalorder %s14, 0
      %p76 = por %p74, %p75
      %p77 = scmp.ne.s32.totalorder %s69, %s71
      %p78 = scmp.eq.s32.totalorder %s19, 1
      %p79 = por %p77, %p78
      %p80 = scmp.ne.s32.totalorder %s71, %s72
      %p81 = scmp.eq.s32.totalorder %s19, 0
      %p82 = por %p80, %p81
      %p83 = scmp.ne.s32.totalorder %s71, %s72
      %p84 = scmp.eq.s32.totalorder %s20, 1
      %p85 = por %p83, %p84
      %p87 = scmp.ne.s32.totalorder %s72, %s86
      %p88 = scmp.eq.s32.totalorder %s20, 0
      %p89 = por %p87, %p88
      %s90 = ssub.s32 %s14, %s21
      %p91 = scmp.eq.s32.totalorder %s90, 0
      %s93 = sadd.s32 %s92, 1
      %s94 = scalar_select %p91, %s92, %s93
      %p97 = pneg %p91
      %p98 = scmp.eq.s32.totalorder %s14, 1
      %p99 = por %p97, %p98
      %p100 = scmp.ne.s32.totalorder %s92, %s95
      %p101 = scmp.eq.s32.totalorder %s14, 0
      %p102 = por %p100, %p101
      %p103 = scmp.ne.s32.totalorder %s92, %s95
      %p104 = scmp.eq.s32.totalorder %s19, 1
      %p105 = por %p103, %p104
      %p106 = scmp.ne.s32.totalorder %s95, %s96
      %p107 = scmp.eq.s32.totalorder %s19, 0
      %p108 = por %p106, %p107
      %p109 = scmp.ne.s32.totalorder %s95, %s96
      %p110 = scmp.eq.s32.totalorder %s20, 1
      %p111 = por %p109, %p110
      %p113 = scmp.ne.s32.totalorder %s96, %s112
      %p114 = scmp.eq.s32.totalorder %s20, 0
      %p115 = por %p113, %p114
      %s116 = ssub.s32 %s14, %s21
      %p117 = scmp.eq.s32.totalorder %s116, 0
      %s119 = sadd.s32 %s118, 1
      %s120 = scalar_select %p117, %s118, %s119
      %p123 = pneg %p117
      %p124 = scmp.eq.s32.totalorder %s14, 1
      %p125 = por %p123, %p124
      %p126 = scmp.ne.s32.totalorder %s118, %s121
      %p127 = scmp.eq.s32.totalorder %s14, 0
      %p128 = por %p126, %p127
      %p129 = scmp.ne.s32.totalorder %s118, %s121
      %p130 = scmp.eq.s32.totalorder %s19, 1
      %p131 = por %p129, %p130
      %p132 = scmp.ne.s32.totalorder %s121, %s122
      %p133 = scmp.eq.s32.totalorder %s19, 0
      %p134 = por %p132, %p133
      %p135 = scmp.ne.s32.totalorder %s121, %s122
      %p136 = scmp.eq.s32.totalorder %s20, 1
      %p137 = por %p135, %p136
      %p139 = scmp.ne.s32.totalorder %s122, %s138
      %p140 = scmp.eq.s32.totalorder %s20, 0
      %p141 = por %p139, %p140
      %p142 = scmp.le.s32.totalorder 1, %s14
      %p143 = scmp.lt.s32.totalorder %s14, 3
      %p144 = pnand %p142, %p143
      %p145 = pneg %p144
      // Predicated region
      $region9: #{tpu_custom_call.1} parent=5 // pred_check
        _
      $region10: #{tpu_custom_call.1} parent=5 // pred_check_branch
        %147 = sbr.rel (%p144) target = $region12
      $region11: #{tpu_custom_call.1} parent=5 // pred_region
        %s148 = ssub.s32 %s14, 1
        // Predicated region
        $region13: #{tpu_custom_call.1} parent=11 // pred_check
          %p149 = pneg %p61
        $region14: #{tpu_custom_call.1} parent=11 // pred_check_branch
          %151 = sbr.rel (%p149) target = $region16
        $region15: #{tpu_custom_call.1} parent=11 // pred_region
          _
        $region16: #{tpu_custom_call.1} parent=11 // pred_fallthru
          _
        // Predicated region
        $region17: #{tpu_custom_call.1} parent=11 // pred_check
          %p152 = pneg %p82
        $region18: #{tpu_custom_call.1} parent=11 // pred_check_branch
          %154 = sbr.rel (%p152) target = $region20
        $region19: #{tpu_custom_call.1} parent=11 // pred_region
          _
        $region20: #{tpu_custom_call.1} parent=11 // pred_fallthru
          _
      $region12: #{tpu_custom_call.1} parent=5 // pred_fallthru
        _
      %p155 = scmp.lt.s32.totalorder %s14, 2
      // Predicated region
      $region21: #{tpu_custom_call.1} parent=5 // pred_check
        %p156 = pneg %p155
      $region22: #{tpu_custom_call.1} parent=5 // pred_check_branch
        %158 = sbr.rel (%p156) target = $region24
      $region23: #{tpu_custom_call.1} parent=5 // pred_region
        // Predicated region
        $region25: #{tpu_custom_call.1} parent=23 // pred_check
          %p159 = pneg %p34
        $region26: #{tpu_custom_call.1} parent=23 // pred_check_branch
          %161 = sbr.rel (%p159) target = $region28
        $region27: #{tpu_custom_call.1} parent=23 // pred_region
          %p162 = scmp.lt.s32.totalorder %s14, 1
          %s163 = scalar_select %p162, %s14, 1
          %s164 = smul.addr %s163, 8
          %s165 = scalar_lea.vmem %s0, %s164
        $region28: #{tpu_custom_call.1} parent=23 // pred_fallthru
          _
      $region24: #{tpu_custom_call.1} parent=5 // pred_fallthru
        _
      %p166 = scmp.le.s32.totalorder 1, %s14
      %p167 = scmp.lt.s32.totalorder %s14, 3
      %p168 = pnand %p166, %p167
      %p169 = pneg %p168
      // Predicated region
      $region29: #{tpu_custom_call.1} parent=5 // pred_check
        _
      $region30: #{tpu_custom_call.1} parent=5 // pred_check_branch
        %171 = sbr.rel (%p168) target = $region32
      $region31: #{tpu_custom_call.1} parent=5 // pred_region
        %s172 = ssub.s32 %s14, 1
        %p173 = scmp.lt.s32.totalorder %s19, 1
        %s174 = scalar_select %p173, %s19, 1
        %s175 = smul.addr %s174, 8
        %s176 = scalar_lea.vmem %s0, %s175
        %p177 = pneg %p40
        %p178 = pneg %p37
        %p179 = pneg %p61
        %p180 = pneg %p58
        %p181 = pneg %p82
        %p182 = pneg %p79
        %p183 = pneg %p108
        %p184 = pneg %p105
        %s185 = sand.u32 %s95, 1
        %s186 = scalar_lea.sflag [#allocation3], %s185
        %s187 = sand.u32 %s95, 1
        %s188 = smul.addr %s187, 8
        %s189 = scalar_lea.vmem [#allocation2], %s188
        %p190 = pneg %p134
        %p191 = pneg %p131
        %p192 = scmp.lt.s32.totalorder %s19, 1
        %s193 = scalar_select %p192, %s19, 1
        %s194 = smul.addr %s193, 8
        %s195 = scalar_lea.vmem %s4, %s194
        %p196 = scmp.lt.s32.totalorder %s19, 1
        %s197 = scalar_select %p196, %s19, 1
        %s198 = smul.addr %s197, 8
        %s199 = scalar_lea.vmem %s0, %s198
        %p200 = scmp.lt.s32.totalorder %s19, 1
        %s201 = scalar_select %p200, %s19, 1
        %s202 = smul.addr %s201, 8
        %s203 = scalar_lea.vmem %s4, %s202
        %v204 = vld [vmem:[%s199] sm:$0xff]
        %vm205 = vcmask 130048
        %v206 = vsel %vm205, %v204, 0.0
        %207 = vadd.xlane.f32.xlu0 %v206
        %v208 = vpop.xlane.xlu0 %207
        %v209 = vmul.f32 %v208, 0.0625
        %v210 = vmul.f32 %v204, %v204
        %v211 = vsel %vm205, %v210, 0.0
        %212 = vadd.xlane.f32.xlu0 %v211
        %v213 = vpop.xlane.xlu0 %212
        %v214 = vmul.f32 %v213, 0.0625
        %v215 = vmul.f32 %v209, %v209
        %v216 = vsub.f32 %v214, %v215
        %v217 = vmax.f32 %v216, 0.0
        %v218 = vadd.f32 %v217, 1e-05
        %v219 = vrsqrt.pop %v218
        %v220 = vmul.f32 %v218, %v219
        %vm221 = vcmp.eq.f32.partialorder %v218, inf
        %v222 = vsel %vm221, %v218, %v220
        %vm223 = vcmp.eq.f32.partialorder %v218, 0.0
        %v224 = vand.u32 %v218, 2147483648
        %v225 = vsel %vm223, %v224, %v222
        %v226 = vrcp.pop %v225
        %v227 = vmul.f32 1.0, %v226
        %v228 = vld [vmem:[%s1] sm:$0xff]
        %v229 = vmul.f32 %v228, %v227
        %v230 = vld [vmem:[%s2] sm:$0xff]
        %v231 = vmul.f32 %v209, %v229
        %v232 = vsub.f32 %v230, %v231
        %234 = vset.pattern.permute.xlu0 0
        %235 = vperm.xlu0 %234, %v229
        %v236 = vpop.permute.xlu0 %235
        %v238 = vmul.f32 %v204, %v236
        %240 = vset.pattern.permute.xlu0 0
        %241 = vperm.xlu0 %240, %v232
        %v242 = vpop.permute.xlu0 %241
        %v244 = vadd.f32 %v238, %v242
        %245 = vst.msk [vmem:[%s189] sm:$0xff] %vm205, %v244
        %vm246 = vcmask 7168
        %247 = vst.msk [vmem:[%s203] sm:$0xff] %vm246, %v209
        %vm248 = vcmask 15368
        %249 = vst.msk [vmem:[%s203] sm:$0xff] %vm248, %v225
        %s250 = sand.u32 %s95, 1
        %s251 = scalar_lea.sflag [#allocation3], %s250
        %s252 = sand.u32 %s95, 1
        %s253 = smul.addr %s252, 8
        %s254 = scalar_lea.vmem [#allocation2], %s253
        %p255 = scmp.lt.s32.totalorder %s19, 1
        %s256 = scalar_select %p255, %s19, 1
        %s257 = smul.addr %s256, 8
        %s258 = scalar_lea.vmem %s4, %s257
        // Predicated region
        $region33: #{tpu_custom_call.1} parent=31 // pred_check
          %p259 = pneg %p105
        $region34: #{tpu_custom_call.1} parent=31 // pred_check_branch
          %261 = sbr.rel (%p259) target = $region36
        $region35: #{tpu_custom_call.1} parent=31 // pred_region
          %s263 = ssub.s32 128, 128
          %264 = vsyncadd %s251, %s263
          %s265 = smul.addr %s19, 128
          %s266 = scalar_lea.hbm %s3, %s265
          %s268 = sshll.u32 %s254, 4
          %s269 = int_to_ptr.vmem [resolvable:$true] %s268
          %271 = dma.vmem_to_hbm [thread:$0]  %s269, 128, %s266, %s251
        $region36: #{tpu_custom_call.1} parent=31 // pred_fallthru
          _
        // Predicated region
        $region37: #{tpu_custom_call.1} parent=31 // pred_check
          %p272 = pneg %p131
        $region38: #{tpu_custom_call.1} parent=31 // pred_check_branch
          %274 = sbr.rel (%p272) target = $region40
        $region39: #{tpu_custom_call.1} parent=31 // pred_region
          _
        $region40: #{tpu_custom_call.1} parent=31 // pred_fallthru
          _
      $region32: #{tpu_custom_call.1} parent=5 // pred_fallthru
        _
      %p275 = scmp.le.s32.totalorder 2, %s14
      // Predicated region
      $region41: #{tpu_custom_call.1} parent=5 // pred_check
        %p276 = pneg %p275
      $region42: #{tpu_custom_call.1} parent=5 // pred_check_branch
        %278 = sbr.rel (%p276) target = $region44
      $region43: #{tpu_custom_call.1} parent=5 // pred_region
        %s279 = ssub.s32 %s14, 2
        // Predicated region
        $region45: #{tpu_custom_call.1} parent=43 // pred_check
          %p280 = pneg %p111
        $region46: #{tpu_custom_call.1} parent=43 // pred_check_branch
          %282 = sbr.rel (%p280) target = $region48
        $region47: #{tpu_custom_call.1} parent=43 // pred_region
          %s283 = sand.u32 %s96, 1
          %s284 = scalar_lea.sflag [#allocation3], %s283
          %s285 = sand.u32 %s96, 1
          %s286 = smul.addr %s285, 8
          %s287 = scalar_lea.vmem [#allocation2], %s286
          %288 = dma.done %s284, 128
        $region48: #{tpu_custom_call.1} parent=43 // pred_fallthru
          _
        // Predicated region
        $region49: #{tpu_custom_call.1} parent=43 // pred_check
          %p289 = pneg %p137
        $region50: #{tpu_custom_call.1} parent=43 // pred_check_branch
          %291 = sbr.rel (%p289) target = $region52
        $region51: #{tpu_custom_call.1} parent=43 // pred_region
          %p292 = scmp.lt.s32.totalorder %s20, 1
          %s293 = scalar_select %p292, %s20, 1
          %s294 = smul.addr %s293, 8
          %s295 = scalar_lea.vmem %s4, %s294
        $region52: #{tpu_custom_call.1} parent=43 // pred_fallthru
          _
      $region44: #{tpu_custom_call.1} parent=5 // pred_fallthru
        _
    $region6: #{tpu_custom_call.1} parent=1 // loop_footer
      %s18 = sadd.s32 1, %s14
    $region7: #{tpu_custom_call.1} parent=1 // loop_footer_branch
      %13 = sbr.rel target = $region3
    $region8: #{tpu_custom_call.1} parent=1 // loop_exit
      _
    %296 = vsyncpa [#allocation3], 1
    %s297 = scalar_lea.sflag [#allocation3], 1
    %298 = vsyncpa %s297, 1

</llo_original>
